<compile_context>
chip_gen: v7x
topology: tpu7x:2x2x1
jax: 0.10.0
libtpu: 0.0.40
codegen_flags: <defaults>
</compile_context>

<pallas_src>
import math
import jax
import jax.numpy as jnp
from jax.experimental import pallas as pl
from jax.experimental.pallas import tpu as pltpu


def _choose_tile(n, target, align):
    """Largest multiple of `align` that evenly divides n and is <= target.

    Falls back to the full dimension (a full-extent block is always legal
    w.r.t. the (8,128) constraint)."""
    if n <= target:
        return n
    t = (target // align) * align
    while t >= align:
        if n % t == 0:
            return t
        t -= align
    return n


def _sum_mid_kernel(x_ref, o_ref, acc_ref):
    # x_ref:   (bo, rt, ti) VMEM  -- reduce over axis 1 (sublane axis)
    # o_ref:   (bo, ti)     VMEM  -- lane-dense output slab
    # acc_ref: (bo, ti)     VMEM scratch accumulator
    k = pl.program_id(2)

    @pl.when(k == 0)
    def _init():
        acc_ref[...] = jnp.zeros_like(acc_ref)

    acc_ref[...] += jnp.sum(x_ref[...].astype(acc_ref.dtype), axis=1)

    @pl.when(k == pl.num_programs(2) - 1)
    def _flush():
        o_ref[...] = acc_ref[...].astype(o_ref.dtype)


def _sum_last_kernel(x_ref, o_ref, acc_ref):
    # x_ref:   (tm, rt) VMEM  -- reduce over the lane axis
    # o_ref:   (tm, 1)  VMEM
    # acc_ref: (tm, 1)  VMEM scratch accumulator
    k = pl.program_id(1)

    @pl.when(k == 0)
    def _init():
        acc_ref[...] = jnp.zeros_like(acc_ref)

    acc_ref[...] += jnp.sum(x_ref[...].astype(acc_ref.dtype), axis=1,
                            keepdims=True)

    @pl.when(k == pl.num_programs(1) - 1)
    def _flush():
        o_ref[...] = acc_ref[...].astype(o_ref.dtype)


def pallas_sum(x, dim, keepdim=False):
    """torch.sum(x, dim, keepdim) equivalent via a tiled Pallas TPU kernel."""
    ndim = x.ndim
    dim = dim % ndim
    shape = x.shape
    R = shape[dim]
    outer = math.prod(shape[:dim])        # () -> 1
    inner = math.prod(shape[dim + 1:])    # () -> 1

    acc_dtype = jnp.float32 if jnp.issubdtype(x.dtype, jnp.floating) else jnp.int32

    if inner == 1:
        # ---- Reduction over the trailing (lane) axis: view as (outer, R). ----
        x2 = x.reshape(outer, R)
        tm = _choose_tile(outer, 512, 8)      # sublane axis of the block
        rt = _choose_tile(R, 1024, 128)       # lane axis (reduced)
        grid = (outer // tm, R // rt)         # reduction axis last
        out2 = pl.pallas_call(
            _sum_last_kernel,
            out_shape=jax.ShapeDtypeStruct((outer, 1), x.dtype),
            grid_spec=pltpu.PrefetchScalarGridSpec(
                num_scalar_prefetch=0,
                grid=grid,
                in_specs=[pl.BlockSpec((tm, rt), lambda i, k: (i, k))],
                out_specs=pl.BlockSpec((tm, 1), lambda i, k: (i, 0)),
                scratch_shapes=[pltpu.VMEM((tm, 1), acc_dtype)],
            ),
            compiler_params=pltpu.CompilerParams(
                dimension_semantics=("parallel", "arbitrary")),
        )(x2)
        out_flat = out2
    else:
        # ---- Reduction over a middle axis: view as (outer, R, inner). ----
        # `inner` stays on the lane dim, so output stores are lane-dense.
        x3 = x.reshape(outer, R, inner)
        bo = _choose_tile(outer, 128, 8)      # leading dim of x, sublane dim of out
        rt = _choose_tile(R, 512, 8)          # reduced (sublane) axis of x block
        ti = _choose_tile(inner, 512, 128)    # lane axis
        grid = (outer // bo, inner // ti, R // rt)   # reduction axis last
        out2 = pl.pallas_call(
            _sum_mid_kernel,
            out_shape=jax.ShapeDtypeStruct((outer, inner), x.dtype),
            grid_spec=pltpu.PrefetchScalarGridSpec(
                num_scalar_prefetch=0,
                grid=grid,
                in_specs=[pl.BlockSpec((bo, rt, ti), lambda i, j, k: (i, k, j))],
                out_specs=pl.BlockSpec((bo, ti), lambda i, j, k: (i, j)),
                scratch_shapes=[pltpu.VMEM((bo, ti), acc_dtype)],
            ),
            compiler_params=pltpu.CompilerParams(
                dimension_semantics=("parallel", "parallel", "arbitrary")),
        )(x3)
        out_flat = out2

    if keepdim:
        out_shape = shape[:dim] + (1,) + shape[dim + 1:]
    else:
        out_shape = shape[:dim] + shape[dim + 1:]
    return out_flat.reshape(out_shape)


class Sum:
    """Pallas-backed equivalent of the PyTorch `Sum` module."""

    def __init__(self, dim, keepdim=False):
        self.dim = dim
        self.keepdim = keepdim

    def __call__(self, x):
        return pallas_sum(x, self.dim, self.keepdim)


if __name__ == "__main__":
    key = jax.random.PRNGKey(0)
    x = jax.random.normal(key, (2, 4, 16, 16), jnp.float32)

    # Middle-dim reduction, keepdim=False (module defaults): Sum(dim=1).
    y1 = Sum(dim=1)(x)
    y1 = jax.block_until_ready(y1)
    ref1 = jnp.sum(x, axis=1)
    assert y1.shape == ref1.shape, (y1.shape, ref1.shape)
    assert jnp.allclose(y1, ref1, atol=1e-5, rtol=1e-5), "mismatch (dim=1)"

    # Trailing-dim reduction with keepdim=True: Sum(dim=-1, keepdim=True).
    y2 = Sum(dim=-1, keepdim=True)(x)
    y2 = jax.block_until_ready(y2)
    ref2 = jnp.sum(x, axis=-1, keepdims=True)
    assert y2.shape == ref2.shape, (y2.shape, ref2.shape)
    assert jnp.allclose(y2, ref2, atol=1e-5, rtol=1e-5), "mismatch (dim=-1)"

    print("KERNEL_OK")
</pallas_src>

<mosaic_0001>
module attributes {stable_mosaic.version = 11 : i64} {
  func.func @_sum_mid_kernel(%arg0: i32, %arg1: i32, %arg2: i32, %arg3: memref<2x4x256xf32, #tpu.memory_space<vmem>>, %arg4: memref<2x256xf32, #tpu.memory_space<vmem>>, %arg5: memref<2x256xf32, #tpu.memory_space<vmem>>) attributes {dimension_semantics = [#tpu.dimension_semantics<parallel>, #tpu.dimension_semantics<parallel>, #tpu.dimension_semantics<arbitrary>], iteration_bounds = array<i64: 1, 1, 1>, scalar_prefetch = 0 : i64, scratch_operands = 1 : i64, tpu.core_type = #tpu.core_type<tc>, window_params = [{transform_indices = @transform_0, window_bounds = array<i64: 2, 4, 256>}, {transform_indices = @transform_1, window_bounds = array<i64: 2, 256>}]} {
    %c0_i32 = arith.constant 0 : i32
    %0 = arith.cmpi eq, %arg2, %c0_i32 : i32
    %1 = arith.extui %0 : i1 to i32
    %c0_i32_0 = arith.constant 0 : i32
    %2 = arith.cmpi ne, %1, %c0_i32_0 : i32
    scf.if %2 {
      %cst_9 = arith.constant 0.000000e+00 : f32
      %11 = vector.broadcast %cst_9 : f32 to vector<2x256xf32>
      %c0_10 = arith.constant 0 : index
      %c0_11 = arith.constant 0 : index
      %12 = vector.load %arg5[%c0_10, %c0_11] : memref<2x256xf32, #tpu.memory_space<vmem>>, vector<2x256xf32>
      tpu.vector_store %arg5[%c0_10, %c0_11], %11 {strides = array<i32>} : memref<2x256xf32, #tpu.memory_space<vmem>>, vector<2x256xf32>,
    } else {
    }
    %c0 = arith.constant 0 : index
    %c0_1 = arith.constant 0 : index
    %3 = vector.load %arg5[%c0, %c0_1] : memref<2x256xf32, #tpu.memory_space<vmem>>, vector<2x256xf32>
    %c0_2 = arith.constant 0 : index
    %c0_3 = arith.constant 0 : index
    %c0_4 = arith.constant 0 : index
    %4 = vector.load %arg3[%c0_2, %c0_3, %c0_4] : memref<2x4x256xf32, #tpu.memory_space<vmem>>, vector<2x4x256xf32>
    %cst = arith.constant dense<0.000000e+00> : vector<2x256xf32>
    %5 = vector.multi_reduction <add>, %4, %cst [1] : vector<2x4x256xf32> to vector<2x256xf32>
    %6 = arith.addf %3, %5 : vector<2x256xf32>
    %c0_5 = arith.constant 0 : index
    %c0_6 = arith.constant 0 : index
    %7 = vector.load %arg5[%c0_5, %c0_6] : memref<2x256xf32, #tpu.memory_space<vmem>>, vector<2x256xf32>
    tpu.vector_store %arg5[%c0_5, %c0_6], %6 {strides = array<i32>} : memref<2x256xf32, #tpu.memory_space<vmem>>, vector<2x256xf32>,
    %c0_i32_7 = arith.constant 0 : i32
    %8 = arith.cmpi eq, %arg2, %c0_i32_7 : i32
    %9 = arith.extui %8 : i1 to i32
    %c0_i32_8 = arith.constant 0 : i32
    %10 = arith.cmpi ne, %9, %c0_i32_8 : i32
    scf.if %10 {
      %c0_9 = arith.constant 0 : index
      %c0_10 = arith.constant 0 : index
      %11 = vector.load %arg5[%c0_9, %c0_10] : memref<2x256xf32, #tpu.memory_space<vmem>>, vector<2x256xf32>
      %c0_11 = arith.constant 0 : index
      %c0_12 = arith.constant 0 : index
      %12 = vector.load %arg4[%c0_11, %c0_12] : memref<2x256xf32, #tpu.memory_space<vmem>>, vector<2x256xf32>
      tpu.vector_store %arg4[%c0_11, %c0_12], %11 {strides = array<i32>} : memref<2x256xf32, #tpu.memory_space<vmem>>, vector<2x256xf32>,
    } else {
    }
    return
  }
  func.func @transform_0(%arg0: i32, %arg1: i32, %arg2: i32) -> (i32, i32, i32) {
    %c0_i32 = arith.constant 0 : i32
    return %arg0, %arg2, %arg1 : i32, i32, i32
  }
  func.func @transform_1(%arg0: i32, %arg1: i32, %arg2: i32) -> (i32, i32) {
    %c0_i32 = arith.constant 0 : i32
    return %arg0, %arg1 : i32, i32
  }
}

</mosaic_0001>

<llo_original>
// kernel: tpu_custom_call.1
$region0: #{tpu_custom_call.1}
  #allocation0 [shape = 'u32[]', space=smem, size = 0x4, offset = 0x4, fixed_abs, tag = 'smem constant byte address 0x4 - core index']
  #allocation1 [shape = 'u32[144,128]{1,0:T(1,128)}', space=vmem, size = 0x12000, scoped, tag = 'internal scratch']
  #allocation2 [shape = 'f32[2,256]{1,0:T(2,128)}', space=vmem, size = 0x800, scoped, tag = 'scratch operand']
  %s0 = inlined_call_operand.hbm [shape: f32[2,4,256], index: 0, kind: input, shape index: {}]
  %s1 = inlined_call_operand.hbm [shape: f32[2,256], index: 1, kind: output, shape index: {}]
  %s2 = sld [smem:[#allocation0]]
  $region26: #{tpu_custom_call.1} parent=0
    _
  %s4 = ssub.s32 1, %s2
  %s5 = scalar_select 0, %s4, %s2
  $region1: #{tpu_custom_call.1} parent=0
    #allocation3 [shape = 'u8[8192]{0}', space=vmem, size = 0x2000, scoped, tag = 'input window, operand 0, single buffered']
    #allocation4 [shape = 's32[1]{0}', space=sflag, size = 0x4, scoped, tag = 'scoped memory for tpu_custom_call.1']
    #allocation5 [shape = 's32[1]{0}', space=sflag, size = 0x4, scoped, tag = 'scoped memory for tpu_custom_call.1']
    #allocation6 [shape = 'u8[2048]{0}', space=vmem, size = 0x800, scoped, tag = 'output window, operand 0, single buffered']
    %6 = vsyncpa [#allocation4], 0
    %7 = vsyncpa [#allocation5], 0
    // Predicated region
    $region2: #{tpu_custom_call.1} parent=1 // pred_check
      _
    $region3: #{tpu_custom_call.1} parent=1 // pred_check_branch
      %9 = sbr.rel (0) target = $region5
    $region4: #{tpu_custom_call.1} parent=1 // pred_region
      %s11 = ssub.s32 256, 256
      %12 = vsyncadd [#allocation4], %s11
      %s13 = sshll.u32 [#allocation3], 4
      %s14 = int_to_ptr.vmem [resolvable:$true] %s13
      %19 = dma.hbm_to_vmem [thread:$0]  %s0, 256, %s14, [#allocation4], 128, 128, 8
    $region5: #{tpu_custom_call.1} parent=1 // pred_fallthru
      _
    // Predicated region
    $region6: #{tpu_custom_call.1} parent=1 // pred_check
      _
    $region7: #{tpu_custom_call.1} parent=1 // pred_check_branch
      %21 = sbr.rel (0) target = $region9
    $region8: #{tpu_custom_call.1} parent=1 // pred_region
      %22 = dma.done [#allocation4], 256
    $region9: #{tpu_custom_call.1} parent=1 // pred_fallthru
      _
    %p23 = scmp.eq.s32.totalorder 0, 0
    // Predicated region
    $region10: #{tpu_custom_call.1} parent=1 // pred_check
      %p24 = pneg %p23
    $region11: #{tpu_custom_call.1} parent=1 // pred_check_branch
      %26 = sbr.rel (%p24) target = $region13
    $region12: #{tpu_custom_call.1} parent=1 // pred_region
      %27 = vst [vmem:[#allocation2] sm:$0xf] 0.0
    $region13: #{tpu_custom_call.1} parent=1 // pred_fallthru
      _
    %v28 = vld [vmem:[#allocation2] sm:$0xf]
    %v29 = vld [vmem:[#allocation3] sm:$0xff]
    %v30 = vld [vmem:[#allocation3 + $0x8] sm:$0xff]
    %v33 = vcombine.high %v29, %v29
    %v34 = vcombine.high %v30, %v30
    %vm37 = vcmask 1043456
    %v38 = vsel %vm37, %v29, 0.0
    %v39 = vrot.slane %v38, 4
    %v40 = vadd.f32 %v38, %v39
    %v41 = vrot.slane %v40, 2
    %v42 = vadd.f32 %v40, %v41
    %v43 = vrot.slane %v42, 1
    %v44 = vadd.f32 %v42, %v43
    %v45 = vsel %vm37, %v33, 0.0
    %v46 = vrot.slane %v45, 4
    %v47 = vadd.f32 %v45, %v46
    %v48 = vrot.slane %v47, 2
    %v49 = vadd.f32 %v47, %v48
    %v50 = vrot.slane %v49, 1
    %v51 = vadd.f32 %v49, %v50
    %v52 = vsel %vm37, %v30, 0.0
    %v53 = vrot.slane %v52, 4
    %v54 = vadd.f32 %v52, %v53
    %v55 = vrot.slane %v54, 2
    %v56 = vadd.f32 %v54, %v55
    %v57 = vrot.slane %v56, 1
    %v58 = vadd.f32 %v56, %v57
    %v59 = vsel %vm37, %v34, 0.0
    %v60 = vrot.slane %v59, 4
    %v61 = vadd.f32 %v59, %v60
    %v62 = vrot.slane %v61, 2
    %v63 = vadd.f32 %v61, %v62
    %v64 = vrot.slane %v63, 1
    %v65 = vadd.f32 %v63, %v64
    %v70 = vcombine.low %v44, %v51
    %v72 = vunpack.c.l.s4 1983009808
    %v73 = vunpack.c.0.s8 %v72
    %v74 = vlaneseq
    %v75 = vshrl.u32 %v74, 7
    %v76 = vsub.s32 %v73, %v75
    %v77 = vrot.slane %v70, %v76
    %v78 = vcombine.low %v58, %v65
    %v80 = vunpack.c.l.s4 1983009808
    %v81 = vunpack.c.0.s8 %v80
    %v82 = vlaneseq
    %v83 = vshrl.u32 %v82, 7
    %v84 = vsub.s32 %v81, %v83
    %v85 = vrot.slane %v78, %v84
    %vm86 = vcmask 1044484
    %v87 = vsel %vm86, %v77, %v77
    %vm88 = vcmask 1046534
    %v89 = vsel %vm88, %v77, %v87
    %v90 = vrot.slane %v85, 7
    %vm91 = vcmask 1041409
    %v92 = vsel %vm91, %v90, %v89
    %vm93 = vcmask 1043459
    %v94 = vsel %vm93, %v90, %v92
    %vm95 = vcmask 1045509
    %v96 = vsel %vm95, %v90, %v94
    %vm97 = vcmask 1047559
    %v98 = vsel %vm97, %v90, %v96
    %v100 = vadd.f32 %v28, %v98
    %101 = vst [vmem:[#allocation2] sm:$0xf] %v100
    // Predicated region
    $region14: #{tpu_custom_call.1} parent=1 // pred_check
      %p102 = pneg %p23
    $region15: #{tpu_custom_call.1} parent=1 // pred_check_branch
      %104 = sbr.rel (%p102) target = $region17
    $region16: #{tpu_custom_call.1} parent=1 // pred_region
      %v105 = vld [vmem:[#allocation2] sm:$0xf]
      %106 = vst [vmem:[#allocation6] sm:$0xf] %v105
    $region17: #{tpu_custom_call.1} parent=1 // pred_fallthru
      _
    // Predicated region
    $region18: #{tpu_custom_call.1} parent=1 // pred_check
      _
    $region19: #{tpu_custom_call.1} parent=1 // pred_check_branch
      %108 = sbr.rel (0) target = $region21
    $region20: #{tpu_custom_call.1} parent=1 // pred_region
      %s110 = ssub.s32 64, 64
      %111 = vsyncadd [#allocation5], %s110
      %s113 = sshll.u32 [#allocation6], 4
      %s114 = int_to_ptr.vmem [resolvable:$true] %s113
      %116 = dma.vmem_to_hbm [thread:$0]  %s114, 64, %s1, [#allocation5]
    $region21: #{tpu_custom_call.1} parent=1 // pred_fallthru
      _
    // Predicated region
    $region22: #{tpu_custom_call.1} parent=1 // pred_check
      _
    $region23: #{tpu_custom_call.1} parent=1 // pred_check_branch
      %118 = sbr.rel (0) target = $region25
    $region24: #{tpu_custom_call.1} parent=1 // pred_region
      %119 = dma.done [#allocation5], 64
    $region25: #{tpu_custom_call.1} parent=1 // pred_fallthru
      _
    %120 = vsyncpa [#allocation4], 1
    %121 = vsyncpa [#allocation5], 1

</llo_original>
